<compile_context>
chip_gen: v6e
topology: v6e:2x2x1
jax: 0.10.0
libtpu: 0.0.40
codegen_flags: <defaults>
</compile_context>

<pallas_src>
import jax
import jax.numpy as jnp
from jax.experimental import pallas as pl
from jax.experimental.pallas import tpu as pltpu


# --------------------------------------------------------------------------
# Kernel body
# --------------------------------------------------------------------------
def _ffn_kernel(x_ref, w13_ref, w2_ref, o_ref, acc_ref):
    # x_ref:   (tm, D)      bf16
    # w13_ref: (D, 2*th)    bf16   [w1 tile | w3 tile] (leading nh dim squeezed)
    # w2_ref:  (th, D)      bf16   (leading nh dim squeezed)
    # o_ref:   (tm, D)      out dtype
    # acc_ref: (tm, D)      f32 accumulator (persists across the h axis)
    th = w13_ref.shape[1] // 2
    h = pl.program_id(1)

    @pl.when(h == 0)
    def _init():
        acc_ref[...] = jnp.zeros_like(acc_ref)

    x = x_ref[...]
    # One fused MXU contraction for both w1 and w3, f32 accumulation.
    h13 = jnp.dot(x, w13_ref[...], preferred_element_type=jnp.float32)
    h1 = h13[:, :th]
    h3 = h13[:, th:]
    # SwiGLU gating in f32 (VPU/EUP); cast only for the second MXU matmul.
    gated = (h1 * jax.nn.sigmoid(h1)) * h3
    acc_ref[...] += jnp.dot(gated.astype(w2_ref.dtype), w2_ref[...],
                            preferred_element_type=jnp.float32)

    @pl.when(h == pl.num_programs(1) - 1)
    def _finalize():
        o_ref[...] = acc_ref[...].astype(o_ref.dtype)
    # TODO(synk): dropout has p=0.0 in the config, so it is an identity here.


# --------------------------------------------------------------------------
# Sizing helpers
# --------------------------------------------------------------------------
def _round_up(x, m):
    return (x + m - 1) // m * m


def _physical_vmem_bytes():
    try:
        return int(pltpu.get_tpu_info().vmem_capacity_bytes)
    except Exception:
        return 64 * 2**20  # conservative (v7x-sized) fallback


def _vmem_estimate(tm, th, D, in_itemsize, out_itemsize):
    # double-buffered x / w13 / w2 / out tiles + resident f32 accumulator
    return (2 * tm * D * in_itemsize
            + 2 * D * (2 * th) * in_itemsize
            + 2 * th * D * in_itemsize
            + 2 * tm * D * out_itemsize
            + tm * D * 4)


def _choose_th(H, th_cap):
    """128-aligned hidden tile.  Prefer one tile; else pad H up to a multiple
    of the cap when the waste is small, else fall back to an exact divisor."""
    h128 = _round_up(H, 128)
    if h128 <= th_cap:
        return h128                               # single hidden tile
    d = (th_cap // 128) * 128
    best_div = 0
    for cand in range(d, 127, -128):              # largest 128-aligned divisor
        if H % cand == 0:
            best_div = cand
            break
    waste = _round_up(H, d) - H
    if best_div < 256 or waste * 8 <= H:
        return d                                  # pad H up to a multiple of d
    return best_div                               # exact divisor, no padding


def _choose_tm(M, tm_cap):
    if M <= 256:
        return _round_up(M, 16)                   # small/decode: one padded block
    # At least two row blocks so v7x's two TensorCores both get an i block.
    return min(tm_cap, _round_up(-(-M // 2), 128))


# --------------------------------------------------------------------------
# One-time weight preparation (do this at parameter-load time, not per call)
# --------------------------------------------------------------------------
def prepare_ffn(w1_t, w3_t, w2_t, *, compute_dtype=jnp.bfloat16, th=None):
    """w1_t/w3_t: (D, H), w2_t: (H, D) -- transposed nn.Linear weights.

    Returns a dict of pre-cast, pre-packed weights + tiling metadata:
      w13: (nh, D, 2*th)   hidden tile h = contiguous [w1_h | w3_h]
      w2:  (nh, th, D)
    Hidden padding (zeros) is numerically exact for SwiGLU.
    """
    D, H = w1_t.shape
    assert w3_t.shape == (D, H) and w2_t.shape == (H, D)
    assert D % 128 == 0, "n_dim must be a multiple of 128 for this kernel"

    vmem_phys = _physical_vmem_bytes()
    big_vmem = vmem_phys >= 96 * 2**20            # v5e / v6e 128 MiB parts
    tm_cap = 1024 if big_vmem else 512            # v7x (64 MiB): tm <= 512
    th_cap = 1024 if big_vmem else 512
    budget = int(vmem_phys * 0.78)                # headroom for compiler scratch

    if th is None:
        th = _choose_th(H, th_cap)
        isz = jnp.dtype(compute_dtype).itemsize
        # Conservative footprint check assuming f32 activations + max row tile.
        while th > 128 and _vmem_estimate(tm_cap, th, D, isz, 4) > budget:
            th = max(128, (th // 2) // 128 * 128)
    assert th % 128 == 0, "hidden tile must be lane-aligned (multiple of 128)"

    Hp = _round_up(H, th)
    nh = Hp // th

    w1c = w1_t.astype(compute_dtype)
    w3c = w3_t.astype(compute_dtype)
    w2c = w2_t.astype(compute_dtype)
    if Hp != H:
        pad = Hp - H
        w1c = jnp.pad(w1c, ((0, 0), (0, pad)))
        w3c = jnp.pad(w3c, ((0, 0), (0, pad)))
        w2c = jnp.pad(w2c, ((0, pad), (0, 0)))

    # (nh, D, 2*th): hidden tile h is ONE contiguous HBM region [w1_h | w3_h].
    w13 = jnp.concatenate(
        [w1c.reshape(D, nh, th).transpose(1, 0, 2),
         w3c.reshape(D, nh, th).transpose(1, 0, 2)], axis=2)
    w2p = w2c.reshape(nh, th, D)

    return dict(w13=w13, w2=w2p, th=th, D=D, H=H,
                compute_dtype=compute_dtype, tm_cap=tm_cap,
                vmem_budget=budget, vmem_phys=vmem_phys)


# --------------------------------------------------------------------------
# Per-call forward
# --------------------------------------------------------------------------
def ffn_pallas(x, params, *, tm=None):
    """x: (B, T, D).  params: output of prepare_ffn.  Returns (B, T, D)."""
    D = params["D"]
    th = params["th"]
    w13 = params["w13"]
    w2p = params["w2"]
    compute_dtype = params["compute_dtype"]
    nh = w13.shape[0]

    B, T, Din = x.shape
    assert Din == D
    M = B * T
    out_dtype = x.dtype

    if tm is None:
        tm = _choose_tm(M, params["tm_cap"])
    isz = jnp.dtype(compute_dtype).itemsize
    osz = jnp.dtype(out_dtype).itemsize
    budget = params["vmem_budget"]
    while tm > 16 and _vmem_estimate(tm, th, D, isz, osz) > budget:
        tm = max(16, (tm // 2) // 16 * 16)

    Mp = _round_up(M, tm)
    xc = x.reshape(M, D).astype(compute_dtype)
    if Mp != M:
        xc = jnp.pad(xc, ((0, Mp - M), (0, 0)))

    est = _vmem_estimate(tm, th, D, isz, osz)
    vmem_limit = int(min(max(est * 3 // 2, 32 * 2**20),
                         int(params["vmem_phys"] * 0.78)))

    out = pl.pallas_call(
        _ffn_kernel,
        out_shape=jax.ShapeDtypeStruct((Mp, D), out_dtype),
        grid_spec=pltpu.PrefetchScalarGridSpec(
            num_scalar_prefetch=0,
            grid=(Mp // tm, nh),                                   # reduction last
            in_specs=[
                pl.BlockSpec((tm, D), lambda i, h: (i, 0)),              # x tile
                pl.BlockSpec((None, D, 2 * th), lambda i, h: (h, 0, 0)),  # [w1|w3]_h
                pl.BlockSpec((None, th, D), lambda i, h: (h, 0, 0)),      # w2_h
            ],
            out_specs=pl.BlockSpec((tm, D), lambda i, h: (i, 0)),
            scratch_shapes=[pltpu.VMEM((tm, D), jnp.float32)],
        ),
        compiler_params=pltpu.CompilerParams(
            dimension_semantics=("parallel", "arbitrary"),
            vmem_limit_bytes=vmem_limit),
    )(xc, w13, w2p)

    if Mp != M:
        out = out[:M]
    return out.reshape(B, T, D)


def ffn_reference(x, w1_t, w3_t, w2_t, compute_dtype=jnp.bfloat16):
    """Pure-JAX reference matching the kernel's bf16-matmul / f32-gating path."""
    xc = x.astype(compute_dtype)
    h1 = jnp.dot(xc, w1_t.astype(compute_dtype),
                 preferred_element_type=jnp.float32)
    h3 = jnp.dot(xc, w3_t.astype(compute_dtype),
                 preferred_element_type=jnp.float32)
    gated = (h1 * jax.nn.sigmoid(h1)) * h3
    out = jnp.dot(gated.astype(compute_dtype), w2_t.astype(compute_dtype),
                  preferred_element_type=jnp.float32)
    return out.astype(x.dtype)


if __name__ == "__main__":
    # Config (defaults from LlamaConfig)
    n_dim = 256
    multiple_of = 256
    hidden_dim = int(2 * (4 * n_dim) / 3)
    hidden_dim = multiple_of * ((hidden_dim + multiple_of - 1) // multiple_of)  # 768

    B, T = 2, 8

    key = jax.random.PRNGKey(0)
    kx, k1, k2, k3 = jax.random.split(key, 4)
    x = jax.random.normal(kx, (B, T, n_dim), dtype=jnp.float32)
    # nn.Linear stores (out, in); we keep transposed (in, out) for the kernel.
    scale1 = 1.0 / jnp.sqrt(n_dim)
    scale2 = 1.0 / jnp.sqrt(hidden_dim)
    w1_t = jax.random.uniform(k1, (n_dim, hidden_dim), jnp.float32, -scale1, scale1)
    w3_t = jax.random.uniform(k3, (n_dim, hidden_dim), jnp.float32, -scale1, scale1)
    w2_t = jax.random.uniform(k2, (hidden_dim, n_dim), jnp.float32, -scale2, scale2)

    # One-time weight cast/pack (parameter-load time, NOT per forward call).
    params = prepare_ffn(w1_t, w3_t, w2_t)
    jax.block_until_ready(params["w13"])
    jax.block_until_ready(params["w2"])

    out = jax.block_until_ready(ffn_pallas(x, params))
    ref = ffn_reference(x, w1_t, w3_t, w2_t)

    assert out.shape == (B, T, n_dim)
    assert out.dtype == x.dtype
    max_err = float(jnp.max(jnp.abs(out - ref)))
    assert jnp.allclose(out, ref, atol=1e-2, rtol=1e-2), f"max err {max_err}"
    print("KERNEL_OK")
</pallas_src>

<mosaic_0001>
module attributes {stable_mosaic.version = 11 : i64} {
  func.func @_ffn_kernel(%arg0: i32, %arg1: i32, %arg2: memref<16x256xbf16, #tpu.memory_space<vmem>>, %arg3: memref<1x256x768xbf16, #tpu.memory_space<vmem>>, %arg4: memref<1x384x256xbf16, #tpu.memory_space<vmem>>, %arg5: memref<16x256xf32, #tpu.memory_space<vmem>>, %arg6: memref<16x256xf32, #tpu.memory_space<vmem>>) attributes {dimension_semantics = [#tpu.dimension_semantics<parallel>, #tpu.dimension_semantics<arbitrary>], iteration_bounds = array<i64: 1, 2>, scalar_prefetch = 0 : i64, scratch_operands = 1 : i64, tpu.core_type = #tpu.core_type<tc>, window_params = [{transform_indices = @transform_0, window_bounds = array<i64: 16, 256>}, {transform_indices = @transform_1, window_bounds = array<i64: 1, 256, 768>}, {transform_indices = @transform_2, window_bounds = array<i64: 1, 384, 256>}, {transform_indices = @transform_3, window_bounds = array<i64: 16, 256>}]} {
    %c0_i32 = arith.constant 0 : i32
    %0 = arith.cmpi eq, %arg1, %c0_i32 : i32
    %1 = arith.extui %0 : i1 to i32
    %c0_i32_0 = arith.constant 0 : i32
    %2 = arith.cmpi ne, %1, %c0_i32_0 : i32
    scf.if %2 {
      %cst_15 = arith.constant 0.000000e+00 : f32
      %26 = vector.broadcast %cst_15 : f32 to vector<16x256xf32>
      %c0_16 = arith.constant 0 : index
      %c0_17 = arith.constant 0 : index
      %27 = vector.load %arg6[%c0_16, %c0_17] : memref<16x256xf32, #tpu.memory_space<vmem>>, vector<16x256xf32>
      tpu.vector_store %arg6[%c0_16, %c0_17], %26 {strides = array<i32>} : memref<16x256xf32, #tpu.memory_space<vmem>>, vector<16x256xf32>,
    } else {
    }
    %c0 = arith.constant 0 : index
    %c0_1 = arith.constant 0 : index
    %3 = vector.load %arg2[%c0, %c0_1] : memref<16x256xbf16, #tpu.memory_space<vmem>>, vector<16x256xbf16>
    %c0_2 = arith.constant 0 : index
    %c0_3 = arith.constant 0 : index
    %c0_4 = arith.constant 0 : index
    %4 = vector.load %arg3[%c0_2, %c0_3, %c0_4] : memref<1x256x768xbf16, #tpu.memory_space<vmem>>, vector<1x256x768xbf16>
    %5 = vector.shape_cast %4 : vector<1x256x768xbf16> to vector<256x768xbf16>
    %cst = arith.constant dense<0.000000e+00> : vector<16x768xf32>
    %6 = tpu.matmul %3, %5, %cst {dimension_numbers = #tpu.dot_dimension_numbers<[1], [0], [0], [1], [0, 0, 1, 1], [], []>} : vector<16x256xbf16>, vector<256x768xbf16>, vector<16x768xf32> -> vector<16x768xf32>
    %7 = vector.extract_strided_slice %6 {offsets = [0, 0], sizes = [16, 384], strides = [1, 1]} : vector<16x768xf32> to vector<16x384xf32>
    %8 = vector.extract_strided_slice %6 {offsets = [0, 384], sizes = [16, 384], strides = [1, 1]} : vector<16x768xf32> to vector<16x384xf32>
    %9 = arith.negf %7 : vector<16x384xf32>
    %10 = math.exp %9 : vector<16x384xf32>
    %cst_5 = arith.constant 1.000000e+00 : f32
    %11 = vector.broadcast %cst_5 : f32 to vector<16x384xf32>
    %12 = arith.addf %11, %10 : vector<16x384xf32>
    %13 = arith.divf %11, %12 : vector<16x384xf32>
    %14 = arith.mulf %7, %13 : vector<16x384xf32>
    %15 = arith.mulf %14, %8 : vector<16x384xf32>
    %c0_6 = arith.constant 0 : index
    %c0_7 = arith.constant 0 : index
    %16 = vector.load %arg6[%c0_6, %c0_7] : memref<16x256xf32, #tpu.memory_space<vmem>>, vector<16x256xf32>
    %17 = arith.truncf %15 : vector<16x384xf32> to vector<16x384xbf16>
    %c0_8 = arith.constant 0 : index
    %c0_9 = arith.constant 0 : index
    %c0_10 = arith.constant 0 : index
    %18 = vector.load %arg4[%c0_8, %c0_9, %c0_10] : memref<1x384x256xbf16, #tpu.memory_space<vmem>>, vector<1x384x256xbf16>
    %19 = vector.shape_cast %18 : vector<1x384x256xbf16> to vector<384x256xbf16>
    %cst_11 = arith.constant dense<0.000000e+00> : vector<16x256xf32>
    %20 = tpu.matmul %17, %19, %cst_11 {dimension_numbers = #tpu.dot_dimension_numbers<[1], [0], [0], [1], [0, 0, 1, 1], [], []>} : vector<16x384xbf16>, vector<384x256xbf16>, vector<16x256xf32> -> vector<16x256xf32>
    %21 = arith.addf %16, %20 : vector<16x256xf32>
    %c0_12 = arith.constant 0 : index
    %c0_13 = arith.constant 0 : index
    %22 = vector.load %arg6[%c0_12, %c0_13] : memref<16x256xf32, #tpu.memory_space<vmem>>, vector<16x256xf32>
    tpu.vector_store %arg6[%c0_12, %c0_13], %21 {strides = array<i32>} : memref<16x256xf32, #tpu.memory_space<vmem>>, vector<16x256xf32>,
    %c1_i32 = arith.constant 1 : i32
    %23 = arith.cmpi eq, %arg1, %c1_i32 : i32
    %24 = arith.extui %23 : i1 to i32
    %c0_i32_14 = arith.constant 0 : i32
    %25 = arith.cmpi ne, %24, %c0_i32_14 : i32
    scf.if %25 {
      %c0_15 = arith.constant 0 : index
      %c0_16 = arith.constant 0 : index
      %26 = vector.load %arg6[%c0_15, %c0_16] : memref<16x256xf32, #tpu.memory_space<vmem>>, vector<16x256xf32>
      %c0_17 = arith.constant 0 : index
      %c0_18 = arith.constant 0 : index
      %27 = vector.load %arg5[%c0_17, %c0_18] : memref<16x256xf32, #tpu.memory_space<vmem>>, vector<16x256xf32>
      tpu.vector_store %arg5[%c0_17, %c0_18], %26 {strides = array<i32>} : memref<16x256xf32, #tpu.memory_space<vmem>>, vector<16x256xf32>,
    } else {
    }
    return
  }
  func.func @transform_0(%arg0: i32, %arg1: i32) -> (i32, i32) {
    %c0_i32 = arith.constant 0 : i32
    %c0_i32_0 = arith.constant 0 : i32
    return %arg0, %c0_i32 : i32, i32
  }
  func.func @transform_1(%arg0: i32, %arg1: i32) -> (i32, i32, i32) {
    %c0_i32 = arith.constant 0 : i32
    %c0_i32_0 = arith.constant 0 : i32
    %c0_i32_1 = arith.constant 0 : i32
    return %arg1, %c0_i32, %c0_i32_0 : i32, i32, i32
  }
  func.func @transform_2(%arg0: i32, %arg1: i32) -> (i32, i32, i32) {
    %c0_i32 = arith.constant 0 : i32
    %c0_i32_0 = arith.constant 0 : i32
    %c0_i32_1 = arith.constant 0 : i32
    return %arg1, %c0_i32, %c0_i32_0 : i32, i32, i32
  }
  func.func @transform_3(%arg0: i32, %arg1: i32) -> (i32, i32) {
    %c0_i32 = arith.constant 0 : i32
    %c0_i32_0 = arith.constant 0 : i32
    return %arg0, %c0_i32 : i32, i32
  }
}

</mosaic_0001>

<llo_original>
// kernel: tpu_custom_call.1
$region0: #{tpu_custom_call.1}
  #allocation0 [shape = 'u32[]', space=smem, size = 0x4, offset = 0x4, fixed_abs, tag = 'smem constant byte address 0x4 - core index']
  #allocation1 [shape = 'u32[144,128]{1,0:T(1,128)}', space=vmem, size = 0x12000, scoped, tag = 'internal scratch']
  #allocation2 [shape = 'f32[16,256]{1,0:T(8,128)}', space=vmem, size = 0x4000, scoped, tag = 'scratch operand']
  %s0 = inlined_call_operand.hbm [shape: bf16[16,256], index: 0, kind: input, shape index: {}]
  %s1 = inlined_call_operand.hbm [shape: bf16[2,256,768], index: 1, kind: input, shape index: {}]
  %s2 = inlined_call_operand.hbm [shape: bf16[2,384,256], index: 2, kind: input, shape index: {}]
  %s3 = inlined_call_operand.hbm [shape: f32[16,256], index: 3, kind: output, shape index: {}]
  %s4 = sld [smem:[#allocation0]]
  $region65: #{tpu_custom_call.1} parent=0
    _
  %s6 = ssub.s32 1, %s4
  %s7 = scalar_select 0, %s6, %s4
  $region1: #{tpu_custom_call.1} parent=0
    #allocation3 [shape = 'u8[8192]{0}', space=vmem, size = 0x2000, scoped, tag = 'input window, operand 0, single buffered']
    #allocation4 [shape = 's32[2]{0}', space=sflag, size = 0x8, scoped, tag = 'scoped memory for tpu_custom_call.1']
    #allocation5 [shape = 's32[2]{0}', space=sflag, size = 0x8, scoped, tag = 'scoped memory for tpu_custom_call.1']
    #allocation6 [shape = 'u8[786432]{0}', space=vmem, size = 0xc0000, scoped, tag = 'input window, operand 1']
    #allocation7 [shape = 's32[2]{0}', space=sflag, size = 0x8, scoped, tag = 'scoped memory for tpu_custom_call.1']
    #allocation8 [shape = 'u8[393216]{0}', space=vmem, size = 0x60000, scoped, tag = 'input window, operand 2']
    #allocation9 [shape = 'u8[16384]{0}', space=vmem, size = 0x4000, scoped, tag = 'output window, operand 0, single buffered']
    %8 = vsyncpa [#allocation4], 0
    %9 = vsyncpa [#allocation7], 0
    %s10 = scalar_lea.sflag [#allocation7], 1
    %11 = vsyncpa %s10, 0
    %12 = vsyncpa [#allocation5], 0
    loop: start=0, step=1, limit=4
    $region2: #{tpu_custom_call.1} parent=1 // loop_pre_header
      _
    $region3: #{tpu_custom_call.1} parent=1 // loop_header
      %s14 = sphi 0, %s18
      %p15 = scmp.ge.s32.totalorder %s14, 4
      %s21 = sphi 0, %s33
      %s22 = sphi 0, %s29
      %s23 = sphi 0, %s21
      %s24 = sphi 0, %s22
      %s25 = sphi 0, %s23
      %s26 = sphi 0, %s24
      %s36 = sphi 0, %s38
      %s39 = sphi 0, %s36
      %s40 = sphi 0, %s39
      %s56 = sphi 0, %s40
      %s62 = sphi 0, %s64
      %s65 = sphi 0, %s62
      %s66 = sphi 0, %s65
      %s82 = sphi 0, %s66
      %s88 = sphi 0, %s90
      %s91 = sphi 0, %s88
      %s92 = sphi 0, %s91
      %s108 = sphi 0, %s92
      %s114 = sphi 0, %s116
      %s117 = sphi 0, %s114
      %s118 = sphi 0, %s117
      %s134 = sphi 0, %s118
    $region4: #{tpu_custom_call.1} parent=1 // loop_header_branch
      %17 = sbr.rel (%p15) target = $region8
    $region5: #{tpu_custom_call.1} parent=1 // loop_body
      %s19 = ssub.s32 %s14, 1
      %s20 = ssub.s32 %s14, 2
      %s27 = sadd.s32 1, %s22
      %p28 = scmp.ge.s32.totalorder %s27, 2
      %s29 = scalar_select %p28, 0, %s27
      %s30 = sadd.s32 1, %s21
      %s31 = scalar_select %p28, %s30, %s21
      %p32 = scmp.ge.s32.totalorder %s31, 1
      %s33 = scalar_select %p32, 0, %s31
      %s34 = ssub.s32 %s21, %s33
      %p35 = scmp.eq.s32.totalorder %s34, 0
      %s37 = sadd.s32 %s36, 1
      %s38 = scalar_select %p35, %s36, %s37
      %p41 = pneg %p35
      %p42 = scmp.eq.s32.totalorder %s14, 1
      %p43 = por %p41, %p42
      %p44 = scmp.ne.s32.totalorder %s36, %s39
      %p45 = scmp.eq.s32.totalorder %s14, 0
      %p46 = por %p44, %p45
      %p47 = scmp.ne.s32.totalorder %s36, %s39
      %p48 = scmp.eq.s32.totalorder %s19, 1
      %p49 = por %p47, %p48
      %p50 = scmp.ne.s32.totalorder %s39, %s40
      %p51 = scmp.eq.s32.totalorder %s19, 0
      %p52 = por %p50, %p51
      %p53 = scmp.ne.s32.totalorder %s39, %s40
      %p54 = scmp.eq.s32.totalorder %s20, 1
      %p55 = por %p53, %p54
      %p57 = scmp.ne.s32.totalorder %s40, %s56
      %p58 = scmp.eq.s32.totalorder %s20, 0
      %p59 = por %p57, %p58
      %s60 = ssub.s32 %s22, %s29
      %p61 = scmp.eq.s32.totalorder %s60, 0
      %s63 = sadd.s32 %s62, 1
      %s64 = scalar_select %p61, %s62, %s63
      %p67 = pneg %p61
      %p68 = scmp.eq.s32.totalorder %s14, 1
      %p69 = por %p67, %p68
      %p70 = scmp.ne.s32.totalorder %s62, %s65
      %p71 = scmp.eq.s32.totalorder %s14, 0
      %p72 = por %p70, %p71
      %p73 = scmp.ne.s32.totalorder %s62, %s65
      %p74 = scmp.eq.s32.totalorder %s19, 1
      %p75 = por %p73, %p74
      %p76 = scmp.ne.s32.totalorder %s65, %s66
      %p77 = scmp.eq.s32.totalorder %s19, 0
      %p78 = por %p76, %p77
      %p79 = scmp.ne.s32.totalorder %s65, %s66
      %p80 = scmp.eq.s32.totalorder %s20, 1
      %p81 = por %p79, %p80
      %p83 = scmp.ne.s32.totalorder %s66, %s82
      %p84 = scmp.eq.s32.totalorder %s20, 0
      %p85 = por %p83, %p84
      %s86 = ssub.s32 %s22, %s29
      %p87 = scmp.eq.s32.totalorder %s86, 0
      %s89 = sadd.s32 %s88, 1
      %s90 = scalar_select %p87, %s88, %s89
      %p93 = pneg %p87
      %p94 = scmp.eq.s32.totalorder %s14, 1
      %p95 = por %p93, %p94
      %p96 = scmp.ne.s32.totalorder %s88, %s91
      %p97 = scmp.eq.s32.totalorder %s14, 0
      %p98 = por %p96, %p97
      %p99 = scmp.ne.s32.totalorder %s88, %s91
      %p100 = scmp.eq.s32.totalorder %s19, 1
      %p101 = por %p99, %p100
      %p102 = scmp.ne.s32.totalorder %s91, %s92
      %p103 = scmp.eq.s32.totalorder %s19, 0
      %p104 = por %p102, %p103
      %p105 = scmp.ne.s32.totalorder %s91, %s92
      %p106 = scmp.eq.s32.totalorder %s20, 1
      %p107 = por %p105, %p106
      %p109 = scmp.ne.s32.totalorder %s92, %s108
      %p110 = scmp.eq.s32.totalorder %s20, 0
      %p111 = por %p109, %p110
      %s112 = ssub.s32 %s21, %s33
      %p113 = scmp.eq.s32.totalorder %s112, 0
      %s115 = sadd.s32 %s114, 1
      %s116 = scalar_select %p113, %s114, %s115
      %p119 = pneg %p113
      %p120 = scmp.eq.s32.totalorder %s14, 1
      %p121 = por %p119, %p120
      %p122 = scmp.ne.s32.totalorder %s114, %s117
      %p123 = scmp.eq.s32.totalorder %s14, 0
      %p124 = por %p122, %p123
      %p125 = scmp.ne.s32.totalorder %s114, %s117
      %p126 = scmp.eq.s32.totalorder %s19, 1
      %p127 = por %p125, %p126
      %p128 = scmp.ne.s32.totalorder %s117, %s118
      %p129 = scmp.eq.s32.totalorder %s19, 0
      %p130 = por %p128, %p129
      %p131 = scmp.ne.s32.totalorder %s117, %s118
      %p132 = scmp.eq.s32.totalorder %s20, 1
      %p133 = por %p131, %p132
      %p135 = scmp.ne.s32.totalorder %s118, %s134
      %p136 = scmp.eq.s32.totalorder %s20, 0
      %p137 = por %p135, %p136
      %p138 = scmp.le.s32.totalorder 1, %s14
      %p139 = scmp.lt.s32.totalorder %s14, 3
      %p140 = pnand %p138, %p139
      %p141 = pneg %p140
      // Predicated region
      $region9: #{tpu_custom_call.1} parent=5 // pred_check
        _
      $region10: #{tpu_custom_call.1} parent=5 // pred_check_branch
        %143 = sbr.rel (%p140) target = $region12
      $region11: #{tpu_custom_call.1} parent=5 // pred_region
        %s144 = ssub.s32 %s14, 1
        // Predicated region
        $region13: #{tpu_custom_call.1} parent=11 // pred_check
          %p145 = pneg %p52
        $region14: #{tpu_custom_call.1} parent=11 // pred_check_branch
          %147 = sbr.rel (%p145) target = $region16
        $region15: #{tpu_custom_call.1} parent=11 // pred_region
          %s148 = smul.u32 2, %s23
          %s150 = ssub.s32 256, 256
          %151 = vsyncadd [#allocation4], %s150
          %s152 = smul.addr %s148, 2
          %s153 = smul.addr %s152, 64
          %s154 = scalar_lea.hbm %s0, %s153
          %s155 = sshll.u32 [#allocation3], 4
          %s156 = int_to_ptr.vmem [resolvable:$true] %s155
          %161 = dma.hbm_to_vmem [thread:$0]  %s154, 256, %s156, [#allocation4], 128, 128, 8
        $region16: #{tpu_custom_call.1} parent=11 // pred_fallthru
          _
      $region12: #{tpu_custom_call.1} parent=5 // pred_fallthru
        _
      %p162 = scmp.lt.s32.totalorder %s14, 2
      // Predicated region
      $region17: #{tpu_custom_call.1} parent=5 // pred_check
        %p163 = pneg %p162
      $region18: #{tpu_custom_call.1} parent=5 // pred_check_branch
        %165 = sbr.rel (%p163) target = $region20
      $region19: #{tpu_custom_call.1} parent=5 // pred_region
        // Predicated region
        $region21: #{tpu_custom_call.1} parent=19 // pred_check
          %p166 = pneg %p72
        $region22: #{tpu_custom_call.1} parent=19 // pred_check_branch
          %168 = sbr.rel (%p166) target = $region24
        $region23: #{tpu_custom_call.1} parent=19 // pred_region
          %s169 = sand.u32 %s14, 1
          %s170 = scalar_lea.sflag [#allocation7], %s169
          %s171 = sand.u32 %s62, 1
          %s172 = smul.addr %s171, 768
          %s173 = scalar_lea.vmem [#allocation6], %s172
          %s175 = ssub.s32 12288, 12288
          %176 = vsyncadd %s170, %s175
          %s177 = smul.addr %s22, 192
          %s178 = smul.addr %s177, 64
          %s179 = scalar_lea.hbm %s1, %s178
          %s180 = sshll.u32 %s173, 4
          %s181 = int_to_ptr.vmem [resolvable:$true] %s180
          %186 = dma.hbm_to_vmem [thread:$0]  %s179, 12288, %s181, %s170, 384, 384, 24
        $region24: #{tpu_custom_call.1} parent=19 // pred_fallthru
          _
        // Predicated region
        $region25: #{tpu_custom_call.1} parent=19 // pred_check
          %p187 = pneg %p98
        $region26: #{tpu_custom_call.1} parent=19 // pred_check_branch
          %189 = sbr.rel (%p187) target = $region28
        $region27: #{tpu_custom_call.1} parent=19 // pred_region
          %s190 = sand.u32 %s14, 1
          %s191 = scalar_lea.sflag [#allocation7], %s190
          %s192 = sand.u32 %s88, 1
          %s193 = smul.addr %s192, 384
          %s194 = scalar_lea.vmem [#allocation8], %s193
          %s196 = ssub.s32 6144, 6144
          %197 = vsyncadd %s191, %s196
          %s198 = smul.addr %s22, 96
          %s199 = smul.addr %s198, 64
          %s200 = scalar_lea.hbm %s2, %s199
          %s201 = sshll.u32 %s194, 4
          %s202 = int_to_ptr.vmem [resolvable:$true] %s201
          %207 = dma.hbm_to_vmem [thread:$0]  %s200, 6144, %s202, %s191, 128, 128, 8
        $region28: #{tpu_custom_call.1} parent=19 // pred_fallthru
          _
      $region20: #{tpu_custom_call.1} parent=5 // pred_fallthru
        _
      %p208 = scmp.le.s32.totalorder 1, %s14
      %p209 = scmp.lt.s32.totalorder %s14, 3
      %p210 = pnand %p208, %p209
      %p211 = pneg %p210
      // Predicated region
      $region29: #{tpu_custom_call.1} parent=5 // pred_check
        _
      $region30: #{tpu_custom_call.1} parent=5 // pred_check_branch
        %213 = sbr.rel (%p210) target = $region32
      $region31: #{tpu_custom_call.1} parent=5 // pred_region
        %s214 = ssub.s32 %s14, 1
        // Predicated region
        $region33: #{tpu_custom_call.1} parent=31 // pred_check
          %p215 = pneg %p52
        $region34: #{tpu_custom_call.1} parent=31 // pred_check_branch
          %217 = sbr.rel (%p215) target = $region36
        $region35: #{tpu_custom_call.1} parent=31 // pred_region
          %218 = dma.done [#allocation4], 256
        $region36: #{tpu_custom_call.1} parent=31 // pred_fallthru
          _
        %s219 = sand.u32 %s19, 1
        %s220 = scalar_lea.sflag [#allocation7], %s219
        %s221 = sand.u32 %s65, 1
        %s222 = smul.addr %s221, 768
        %s223 = scalar_lea.vmem [#allocation6], %s222
        // Predicated region
        $region37: #{tpu_custom_call.1} parent=31 // pred_check
          %p224 = pneg %p78
        $region38: #{tpu_custom_call.1} parent=31 // pred_check_branch
          %226 = sbr.rel (%p224) target = $region40
        $region39: #{tpu_custom_call.1} parent=31 // pred_region
          %227 = dma.done %s220, 12288
        $region40: #{tpu_custom_call.1} parent=31 // pred_fallthru
          _
        %s228 = sand.u32 %s19, 1
        %s229 = scalar_lea.sflag [#allocation7], %s228
        %s230 = sand.u32 %s91, 1
        %s231 = smul.addr %s230, 384
        %s232 = scalar_lea.vmem [#allocation8], %s231
        // Predicated region
        $region41: #{tpu_custom_call.1} parent=31 // pred_check
          %p233 = pneg %p104
        $region42: #{tpu_custom_call.1} parent=31 // pred_check_branch
          %235 = sbr.rel (%p233) target = $region44
        $region43: #{tpu_custom_call.1} parent=31 // pred_region
          %236 = dma.done %s229, 6144
        $region44: #{tpu_custom_call.1} parent=31 // pred_fallthru
          _
        %p237 = pneg %p52
        %p238 = pneg %p49
        %s239 = sand.u32 %s19, 1
        %s240 = scalar_lea.sflag [#allocation7], %s239
        %s241 = sand.u32 %s65, 1
        %s242 = smul.addr %s241, 768
        %s243 = scalar_lea.vmem [#allocation6], %s242
        %p244 = pneg %p78
        %p245 = pneg %p75
        %s246 = sand.u32 %s19, 1
        %s247 = scalar_lea.sflag [#allocation7], %s246
        %s248 = sand.u32 %s91, 1
        %s249 = smul.addr %s248, 384
        %s250 = scalar_lea.vmem [#allocation8], %s249
        %p251 = pneg %p104
        %p252 = pneg %p101
        %p253 = pneg %p130
        %p254 = pneg %p127
        %s255 = smul.u32 2, %s23
        %s256 = smul.u32 2, %s23
        %p258 = scmp.eq.s32.totalorder %s24, 0
        // Predicated region
        $region45: #{tpu_custom_call.1} parent=31 // pred_check
          %p259 = pneg %p258
        $region46: #{tpu_custom_call.1} parent=31 // pred_check_branch
          %261 = sbr.rel (%p259) target = $region48
        $region47: #{tpu_custom_call.1} parent=31 // pred_region
          %262 = vst [vmem:[#allocation2] sm:$0xff] 0.0
          %263 = vst [vmem:[#allocation2 + $0x8] sm:$0xff] 0.0
          %264 = vst [vmem:[#allocation2 + $0x10] sm:$0xff] 0.0
          %265 = vst [vmem:[#allocation2 + $0x18] sm:$0xff] 0.0
        $region48: #{tpu_custom_call.1} parent=31 // pred_fallthru
          _
        %v266 = vld [vmem:[#allocation3] sm:$0xff]
        %v267 = vld [vmem:[#allocation3 + $0x8] sm:$0xff]
        %v268 = vld [vmem:[%s223] sm:$0xff]
        %v269 = vld [vmem:[%s223 + $0x8] sm:$0xff]
        %v270 = vld [vmem:[%s223 + $0x10] sm:$0xff]
        %v271 = vld [vmem:[%s223 + $0x18] sm:$0xff]
        %v272 = vld [vmem:[%s223 + $0x20] sm:$0xff]
        %v273 = vld [vmem:[%s223 + $0x28] sm:$0xff]
        %v274 = vld [vmem:[%s223 + $0x30] sm:$0xff]
        %v275 = vld [vmem:[%s223 + $0x38] sm:$0xff]
        %v276 = vld [vmem:[%s223 + $0x40] sm:$0xff]
        %v277 = vld [vmem:[%s223 + $0x48] sm:$0xff]
        %v278 = vld [vmem:[%s223 + $0x50] sm:$0xff]
        %v279 = vld [vmem:[%s223 + $0x58] sm:$0xff]
        %v280 = vld [vmem:[%s223 + $0x60] sm:$0xff]
        %v281 = vld [vmem:[%s223 + $0x68] sm:$0xff]
        %v282 = vld [vmem:[%s223 + $0x70] sm:$0xff]
        %v283 = vld [vmem:[%s223 + $0x78] sm:$0xff]
        %v284 = vld [vmem:[%s223 + $0x80] sm:$0xff]
        %v285 = vld [vmem:[%s223 + $0x88] sm:$0xff]
        %v286 = vld [vmem:[%s223 + $0x90] sm:$0xff]
        %v287 = vld [vmem:[%s223 + $0x98] sm:$0xff]
        %v288 = vld [vmem:[%s223 + $0xa0] sm:$0xff]
        %v289 = vld [vmem:[%s223 + $0xa8] sm:$0xff]
        %v290 = vld [vmem:[%s223 + $0xb0] sm:$0xff]
        %v291 = vld [vmem:[%s223 + $0xb8] sm:$0xff]
        %v292 = vld [vmem:[%s223 + $0xc0] sm:$0xff]
        %v293 = vld [vmem:[%s223 + $0xc8] sm:$0xff]
        %v294 = vld [vmem:[%s223 + $0xd0] sm:$0xff]
        %v295 = vld [vmem:[%s223 + $0xd8] sm:$0xff]
        %v296 = vld [vmem:[%s223 + $0xe0] sm:$0xff]
        %v297 = vld [vmem:[%s223 + $0xe8] sm:$0xff]
        %v298 = vld [vmem:[%s223 + $0xf0] sm:$0xff]
        %v299 = vld [vmem:[%s223 + $0xf8] sm:$0xff]
        %v300 = vld [vmem:[%s223 + $0x100] sm:$0xff]
        %v301 = vld [vmem:[%s223 + $0x108] sm:$0xff]
        %v302 = vld [vmem:[%s223 + $0x110] sm:$0xff]
        %v303 = vld [vmem:[%s223 + $0x118] sm:$0xff]
        %v304 = vld [vmem:[%s223 + $0x120] sm:$0xff]
        %v305 = vld [vmem:[%s223 + $0x128] sm:$0xff]
        %v306 = vld [vmem:[%s223 + $0x130] sm:$0xff]
        %v307 = vld [vmem:[%s223 + $0x138] sm:$0xff]
        %v308 = vld [vmem:[%s223 + $0x140] sm:$0xff]
        %v309 = vld [vmem:[%s223 + $0x148] sm:$0xff]
        %v310 = vld [vmem:[%s223 + $0x150] sm:$0xff]
        %v311 = vld [vmem:[%s223 + $0x158] sm:$0xff]
        %v312 = vld [vmem:[%s223 + $0x160] sm:$0xff]
        %v313 = vld [vmem:[%s223 + $0x168] sm:$0xff]
        %v314 = vld [vmem:[%s223 + $0x170] sm:$0xff]
        %v315 = vld [vmem:[%s223 + $0x178] sm:$0xff]
        %v316 = vld [vmem:[%s223 + $0x180] sm:$0xff]
        %v317 = vld [vmem:[%s223 + $0x188] sm:$0xff]
        %v318 = vld [vmem:[%s223 + $0x190] sm:$0xff]
        %v319 = vld [vmem:[%s223 + $0x198] sm:$0xff]
        %v320 = vld [vmem:[%s223 + $0x1a0] sm:$0xff]
        %v321 = vld [vmem:[%s223 + $0x1a8] sm:$0xff]
        %v322 = vld [vmem:[%s223 + $0x1b0] sm:$0xff]
        %v323 = vld [vmem:[%s223 + $0x1b8] sm:$0xff]
        %v324 = vld [vmem:[%s223 + $0x1c0] sm:$0xff]
        %v325 = vld [vmem:[%s223 + $0x1c8] sm:$0xff]
        %v326 = vld [vmem:[%s223 + $0x1d0] sm:$0xff]
        %v327 = vld [vmem:[%s223 + $0x1d8] sm:$0xff]
        %v328 = vld [vmem:[%s223 + $0x1e0] sm:$0xff]
        %v329 = vld [vmem:[%s223 + $0x1e8] sm:$0xff]
        %v330 = vld [vmem:[%s223 + $0x1f0] sm:$0xff]
        %v331 = vld [vmem:[%s223 + $0x1f8] sm:$0xff]
        %v332 = vld [vmem:[%s223 + $0x200] sm:$0xff]
        %v333 = vld [vmem:[%s223 + $0x208] sm:$0xff]
        %v334 = vld [vmem:[%s223 + $0x210] sm:$0xff]
        %v335 = vld [vmem:[%s223 + $0x218] sm:$0xff]
        %v336 = vld [vmem:[%s223 + $0x220] sm:$0xff]
        %v337 = vld [vmem:[%s223 + $0x228] sm:$0xff]
        %v338 = vld [vmem:[%s223 + $0x230] sm:$0xff]
        %v339 = vld [vmem:[%s223 + $0x238] sm:$0xff]
        %v340 = vld [vmem:[%s223 + $0x240] sm:$0xff]
        %v341 = vld [vmem:[%s223 + $0x248] sm:$0xff]
        %v342 = vld [vmem:[%s223 + $0x250] sm:$0xff]
        %v343 = vld [vmem:[%s223 + $0x258] sm:$0xff]
        %v344 = vld [vmem:[%s223 + $0x260] sm:$0xff]
        %v345 = vld [vmem:[%s223 + $0x268] sm:$0xff]
        %v346 = vld [vmem:[%s223 + $0x270] sm:$0xff]
        %v347 = vld [vmem:[%s223 + $0x278] sm:$0xff]
        %v348 = vld [vmem:[%s223 + $0x280] sm:$0xff]
        %v349 = vld [vmem:[%s223 + $0x288] sm:$0xff]
        %v350 = vld [vmem:[%s223 + $0x290] sm:$0xff]
        %v351 = vld [vmem:[%s223 + $0x298] sm:$0xff]
        %v352 = vld [vmem:[%s223 + $0x2a0] sm:$0xff]
        %v353 = vld [vmem:[%s223 + $0x2a8] sm:$0xff]
        %v354 = vld [vmem:[%s223 + $0x2b0] sm:$0xff]
        %v355 = vld [vmem:[%s223 + $0x2b8] sm:$0xff]
        %v356 = vld [vmem:[%s223 + $0x2c0] sm:$0xff]
        %v357 = vld [vmem:[%s223 + $0x2c8] sm:$0xff]
        %v358 = vld [vmem:[%s223 + $0x2d0] sm:$0xff]
        %v359 = vld [vmem:[%s223 + $0x2d8] sm:$0xff]
        %v360 = vld [vmem:[%s223 + $0x2e0] sm:$0xff]
        %v361 = vld [vmem:[%s223 + $0x2e8] sm:$0xff]
        %v362 = vld [vmem:[%s223 + $0x2f0] sm:$0xff]
        %v363 = vld [vmem:[%s223 + $0x2f8] sm:$0xff]
        %v366 = vunpack.c.l.b16 %v266
        %v367 = vunpack.c.h.b16 %v266
        %v368 = vunpack.c.l.b16 %v267
        %v369 = vunpack.c.h.b16 %v267
        %v370 = vpack.c.b16 %v368, %v366
        %v371 = vpack.c.b16 %v369, %v367
        %v470 = vunpack.c.l.b16 %v268
        %v471 = vunpack.c.h.b16 %v268
        %v472 = vunpack.c.l.b16 %v269
        %v473 = vunpack.c.h.b16 %v269
        %v474 = vunpack.c.l.b16 %v270
        %v475 = vunpack.c.h.b16 %v270
        %v476 = vunpack.c.l.b16 %v271
        %v477 = vunpack.c.h.b16 %v271
        %v478 = vunpack.c.l.b16 %v272
        %v479 = vunpack.c.h.b16 %v272
        %v480 = vunpack.c.l.b16 %v273
        %v481 = vunpack.c.h.b16 %v273
        %v482 = vunpack.c.l.b16 %v274
        %v483 = vunpack.c.h.b16 %v274
        %v484 = vunpack.c.l.b16 %v275
        %v485 = vunpack.c.h.b16 %v275
        %v486 = vunpack.c.l.b16 %v276
        %v487 = vunpack.c.h.b16 %v276
        %v488 = vunpack.c.l.b16 %v277
        %v489 = vunpack.c.h.b16 %v277
        %v490 = vunpack.c.l.b16 %v278
        %v491 = vunpack.c.h.b16 %v278
        %v492 = vunpack.c.l.b16 %v279
        %v493 = vunpack.c.h.b16 %v279
        %v494 = vunpack.c.l.b16 %v280
        %v495 = vunpack.c.h.b16 %v280
        %v496 = vunpack.c.l.b16 %v281
        %v497 = vunpack.c.h.b16 %v281
        %v498 = vunpack.c.l.b16 %v282
        %v499 = vunpack.c.h.b16 %v282
        %v500 = vunpack.c.l.b16 %v283
        %v501 = vunpack.c.h.b16 %v283
        %v502 = vunpack.c.l.b16 %v284
        %v503 = vunpack.c.h.b16 %v284
        %v504 = vunpack.c.l.b16 %v285
        %v505 = vunpack.c.h.b16 %v285
        %v506 = vunpack.c.l.b16 %v286
        %v507 = vunpack.c.h.b16 %v286
        %v508 = vunpack.c.l.b16 %v287
        %v509 = vunpack.c.h.b16 %v287
        %v510 = vunpack.c.l.b16 %v288
        %v511 = vunpack.c.h.b16 %v288
        %v512 = vunpack.c.l.b16 %v289
        %v513 = vunpack.c.h.b16 %v289
        %v514 = vunpack.c.l.b16 %v290
        %v515 = vunpack.c.h.b16 %v290
        %v516 = vunpack.c.l.b16 %v291
        %v517 = vunpack.c.h.b16 %v291
        %v518 = vunpack.c.l.b16 %v292
        %v519 = vunpack.c.h.b16 %v292
        %v520 = vunpack.c.l.b16 %v293
        %v521 = vunpack.c.h.b16 %v293
        %v522 = vunpack.c.l.b16 %v294
        %v523 = vunpack.c.h.b16 %v294
        %v524 = vunpack.c.l.b16 %v295
        %v525 = vunpack.c.h.b16 %v295
        %v526 = vunpack.c.l.b16 %v296
        %v527 = vunpack.c.h.b16 %v296
        %v528 = vunpack.c.l.b16 %v297
        %v529 = vunpack.c.h.b16 %v297
        %v530 = vunpack.c.l.b16 %v298
        %v531 = vunpack.c.h.b16 %v298
        %v532 = vunpack.c.l.b16 %v299
        %v533 = vunpack.c.h.b16 %v299
        %v534 = vunpack.c.l.b16 %v300
        %v535 = vunpack.c.h.b16 %v300
        %v536 = vunpack.c.l.b16 %v301
        %v537 = vunpack.c.h.b16 %v301
        %v538 = vunpack.c.l.b16 %v302
        %v539 = vunpack.c.h.b16 %v302
        %v540 = vunpack.c.l.b16 %v303
        %v541 = vunpack.c.h.b16 %v303
        %v542 = vunpack.c.l.b16 %v304
        %v543 = vunpack.c.h.b16 %v304
        %v544 = vunpack.c.l.b16 %v305
        %v545 = vunpack.c.h.b16 %v305
        %v546 = vunpack.c.l.b16 %v306
        %v547 = vunpack.c.h.b16 %v306
        %v548 = vunpack.c.l.b16 %v307
        %v549 = vunpack.c.h.b16 %v307
        %v550 = vunpack.c.l.b16 %v308
        %v551 = vunpack.c.h.b16 %v308
        %v552 = vunpack.c.l.b16 %v309
        %v553 = vunpack.c.h.b16 %v309
        %v554 = vunpack.c.l.b16 %v310
        %v555 = vunpack.c.h.b16 %v310
        %v556 = vunpack.c.l.b16 %v311
        %v557 = vunpack.c.h.b16 %v311
        %v558 = vunpack.c.l.b16 %v312
        %v559 = vunpack.c.h.b16 %v312
        %v560 = vunpack.c.l.b16 %v313
        %v561 = vunpack.c.h.b16 %v313
        %v562 = vunpack.c.l.b16 %v314
        %v563 = vunpack.c.h.b16 %v314
        %v564 = vunpack.c.l.b16 %v315
        %v565 = vunpack.c.h.b16 %v315
        %v566 = vunpack.c.l.b16 %v316
        %v567 = vunpack.c.h.b16 %v316
        %v568 = vunpack.c.l.b16 %v317
        %v569 = vunpack.c.h.b16 %v317
        %v570 = vunpack.c.l.b16 %v318
        %v571 = vunpack.c.h.b16 %v318
        %v572 = vunpack.c.l.b16 %v319
        %v573 = vunpack.c.h.b16 %v319
        %v574 = vunpack.c.l.b16 %v320
        %v575 = vunpack.c.h.b16 %v320
        %v576 = vunpack.c.l.b16 %v321
        %v577 = vunpack.c.h.b16 %v321
        %v578 = vunpack.c.l.b16 %v322
        %v579 = vunpack.c.h.b16 %v322
        %v580 = vunpack.c.l.b16 %v323
        %v581 = vunpack.c.h.b16 %v323
        %v582 = vunpack.c.l.b16 %v324
        %v583 = vunpack.c.h.b16 %v324
        %v584 = vunpack.c.l.b16 %v325
        %v585 = vunpack.c.h.b16 %v325
        %v586 = vunpack.c.l.b16 %v326
        %v587 = vunpack.c.h.b16 %v326
        %v588 = vunpack.c.l.b16 %v327
        %v589 = vunpack.c.h.b16 %v327
        %v590 = vunpack.c.l.b16 %v328
        %v591 = vunpack.c.h.b16 %v328
        %v592 = vunpack.c.l.b16 %v329
        %v593 = vunpack.c.h.b16 %v329
        %v594 = vunpack.c.l.b16 %v330
        %v595 = vunpack.c.h.b16 %v330
        %v596 = vunpack.c.l.b16 %v331
        %v597 = vunpack.c.h.b16 %v331
        %v598 = vunpack.c.l.b16 %v332
        %v599 = vunpack.c.h.b16 %v332
        %v600 = vunpack.c.l.b16 %v333
        %v601 = vunpack.c.h.b16 %v333
        %v602 = vunpack.c.l.b16 %v334
        %v603 = vunpack.c.h.b16 %v334
        %v604 = vunpack.c.l.b16 %v335
        %v605 = vunpack.c.h.b16 %v335
        %v606 = vunpack.c.l.b16 %v336
        %v607 = vunpack.c.h.b16 %v336
        %v608 = vunpack.c.l.b16 %v337
        %v609 = vunpack.c.h.b16 %v337
        %v610 = vunpack.c.l.b16 %v338
        %v611 = vunpack.c.h.b16 %v338
        %v612 = vunpack.c.l.b16 %v339
        %v613 = vunpack.c.h.b16 %v339
        %v614 = vunpack.c.l.b16 %v340
        %v615 = vunpack.c.h.b16 %v340
        %v616 = vunpack.c.l.b16 %v341
        %v617 = vunpack.c.h.b16 %v341
        %v618 = vunpack.c.l.b16 %v342
        %v619 = vunpack.c.h.b16 %v342
        %v620 = vunpack.c.l.b16 %v343
        %v621 = vunpack.c.h.b16 %v343
        %v622 = vunpack.c.l.b16 %v344
        %v623 = vunpack.c.h.b16 %v344
        %v624 = vunpack.c.l.b16 %v345
        %v625 = vunpack.c.h.b16 %v345
        %v626 = vunpack.c.l.b16 %v346
        %v627 = vunpack.c.h.b16 %v346
        %v628 = vunpack.c.l.b16 %v347
        %v629 = vunpack.c.h.b16 %v347
        %v630 = vunpack.c.l.b16 %v348
        %v631 = vunpack.c.h.b16 %v348
        %v632 = vunpack.c.l.b16 %v349
        %v633 = vunpack.c.h.b16 %v349
        %v634 = vunpack.c.l.b16 %v350
        %v635 = vunpack.c.h.b16 %v350
        %v636 = vunpack.c.l.b16 %v351
        %v637 = vunpack.c.h.b16 %v351
        %v638 = vunpack.c.l.b16 %v352
        %v639 = vunpack.c.h.b16 %v352
        %v640 = vunpack.c.l.b16 %v353
        %v641 = vunpack.c.h.b16 %v353
        %v642 = vunpack.c.l.b16 %v354
        %v643 = vunpack.c.h.b16 %v354
        %v644 = vunpack.c.l.b16 %v355
        %v645 = vunpack.c.h.b16 %v355
        %v646 = vunpack.c.l.b16 %v356
        %v647 = vunpack.c.h.b16 %v356
        %v648 = vunpack.c.l.b16 %v357
        %v649 = vunpack.c.h.b16 %v357
        %v650 = vunpack.c.l.b16 %v358
        %v651 = vunpack.c.h.b16 %v358
        %v652 = vunpack.c.l.b16 %v359
        %v653 = vunpack.c.h.b16 %v359
        %v654 = vunpack.c.l.b16 %v360
        %v655 = vunpack.c.h.b16 %v360
        %v656 = vunpack.c.l.b16 %v361
        %v657 = vunpack.c.h.b16 %v361
        %v658 = vunpack.c.l.b16 %v362
        %v659 = vunpack.c.h.b16 %v362
        %v660 = vunpack.c.l.b16 %v363
        %v661 = vunpack.c.h.b16 %v363
        %v662 = vpack.c.b16 %v476, %v470
        %v663 = vpack.c.b16 %v477, %v471
        %v664 = vpack.c.b16 %v478, %v472
        %v665 = vpack.c.b16 %v479, %v473
        %v666 = vpack.c.b16 %v480, %v474
        %v667 = vpack.c.b16 %v481, %v475
        %v668 = vpack.c.b16 %v488, %v482
        %v669 = vpack.c.b16 %v489, %v483
        %v670 = vpack.c.b16 %v490, %v484
        %v671 = vpack.c.b16 %v491, %v485
        %v672 = vpack.c.b16 %v492, %v486
        %v673 = vpack.c.b16 %v493, %v487
        %v674 = vpack.c.b16 %v500, %v494
        %v675 = vpack.c.b16 %v501, %v495
        %v676 = vpack.c.b16 %v502, %v496
        %v677 = vpack.c.b16 %v503, %v497
        %v678 = vpack.c.b16 %v504, %v498
        %v679 = vpack.c.b16 %v505, %v499
        %v680 = vpack.c.b16 %v512, %v506
        %v681 = vpack.c.b16 %v513, %v507
        %v682 = vpack.c.b16 %v514, %v508
        %v683 = vpack.c.b16 %v515, %v509
        %v684 = vpack.c.b16 %v516, %v510
        %v685 = vpack.c.b16 %v517, %v511
        %v686 = vpack.c.b16 %v524, %v518
        %v687 = vpack.c.b16 %v525, %v519
        %v688 = vpack.c.b16 %v526, %v520
        %v689 = vpack.c.b16 %v527, %v521
        %v690 = vpack.c.b16 %v528, %v522
        %v691 = vpack.c.b16 %v529, %v523
        %v692 = vpack.c.b16 %v536, %v530
        %v693 = vpack.c.b16 %v537, %v531
        %v694 = vpack.c.b16 %v538, %v532
        %v695 = vpack.c.b16 %v539, %v533
        %v696 = vpack.c.b16 %v540, %v534
        %v697 = vpack.c.b16 %v541, %v535
        %v698 = vpack.c.b16 %v548, %v542
        %v699 = vpack.c.b16 %v549, %v543
        %v700 = vpack.c.b16 %v550, %v544
        %v701 = vpack.c.b16 %v551, %v545
        %v702 = vpack.c.b16 %v552, %v546
        %v703 = vpack.c.b16 %v553, %v547
        %v704 = vpack.c.b16 %v560, %v554
        %v705 = vpack.c.b16 %v561, %v555
        %v706 = vpack.c.b16 %v562, %v556
        %v707 = vpack.c.b16 %v563, %v557
        %v708 = vpack.c.b16 %v564, %v558
        %v709 = vpack.c.b16 %v565, %v559
        %v710 = vpack.c.b16 %v572, %v566
        %v711 = vpack.c.b16 %v573, %v567
        %v712 = vpack.c.b16 %v574, %v568
        %v713 = vpack.c.b16 %v575, %v569
        %v714 = vpack.c.b16 %v576, %v570
        %v715 = vpack.c.b16 %v577, %v571
        %v716 = vpack.c.b16 %v584, %v578
        %v717 = vpack.c.b16 %v585, %v579
        %v718 = vpack.c.b16 %v586, %v580
        %v719 = vpack.c.b16 %v587, %v581
        %v720 = vpack.c.b16 %v588, %v582
        %v721 = vpack.c.b16 %v589, %v583
        %v722 = vpack.c.b16 %v596, %v590
        %v723 = vpack.c.b16 %v597, %v591
        %v724 = vpack.c.b16 %v598, %v592
        %v725 = vpack.c.b16 %v599, %v593
        %v726 = vpack.c.b16 %v600, %v594
        %v727 = vpack.c.b16 %v601, %v595
        %v728 = vpack.c.b16 %v608, %v602
        %v729 = vpack.c.b16 %v609, %v603
        %v730 = vpack.c.b16 %v610, %v604
        %v731 = vpack.c.b16 %v611, %v605
        %v732 = vpack.c.b16 %v612, %v606
        %v733 = vpack.c.b16 %v613, %v607
        %v734 = vpack.c.b16 %v620, %v614
        %v735 = vpack.c.b16 %v621, %v615
        %v736 = vpack.c.b16 %v622, %v616
        %v737 = vpack.c.b16 %v623, %v617
        %v738 = vpack.c.b16 %v624, %v618
        %v739 = vpack.c.b16 %v625, %v619
        %v740 = vpack.c.b16 %v632, %v626
        %v741 = vpack.c.b16 %v633, %v627
        %v742 = vpack.c.b16 %v634, %v628
        %v743 = vpack.c.b16 %v635, %v629
        %v744 = vpack.c.b16 %v636, %v630
        %v745 = vpack.c.b16 %v637, %v631
        %v746 = vpack.c.b16 %v644, %v638
        %v747 = vpack.c.b16 %v645, %v639
        %v748 = vpack.c.b16 %v646, %v640
        %v749 = vpack.c.b16 %v647, %v641
        %v750 = vpack.c.b16 %v648, %v642
        %v751 = vpack.c.b16 %v649, %v643
        %v752 = vpack.c.b16 %v656, %v650
        %v753 = vpack.c.b16 %v657, %v651
        %v754 = vpack.c.b16 %v658, %v652
        %v755 = vpack.c.b16 %v659, %v653
        %v756 = vpack.c.b16 %v660, %v654
        %v757 = vpack.c.b16 %v661, %v655
        %854 = vmatprep.subr.bf16.mxu0 %v705
        %855 = vmatpush1.bf16.msra.mxu0 %v704
        %856 = vmatprep.subr.bf16.mxu0 %v699
        %857 = vmatpush1.bf16.msra.mxu0 %v698
        %858 = vmatprep.subr.bf16.mxu0 %v693
        %859 = vmatpush1.bf16.msra.mxu0 %v692
        %860 = vmatprep.subr.bf16.mxu0 %v687
        %861 = vmatpush1.bf16.msra.mxu0 %v686
        %862 = vmatprep.subr.bf16.mxu0 %v681
        %863 = vmatpush1.bf16.msra.mxu0 %v680
        %864 = vmatprep.subr.bf16.mxu0 %v675
        %865 = vmatpush1.bf16.msra.mxu0 %v674
        %866 = vmatprep.subr.bf16.mxu0 %v669
        %867 = vmatpush1.bf16.msra.mxu0 %v668
        %868 = vmatprep.subr.bf16.mxu0 %v663
        %869 = vmatpush1.bf16.msra.mxu0 %v662
        %870 = vmatprep.subr.bf16.mxu0 %v753
        %871 = vmatpush2.bf16.msra.mxu0 %v752
        %872 = vmatprep.subr.bf16.mxu0 %v747
        %873 = vmatpush2.bf16.msra.mxu0 %v746
        %874 = vmatprep.subr.bf16.mxu0 %v741
        %875 = vmatpush2.bf16.msra.mxu0 %v740
        %876 = vmatprep.subr.bf16.mxu0 %v735
        %877 = vmatpush2.bf16.msra.mxu0 %v734
        %878 = vmatprep.subr.bf16.mxu0 %v729
        %879 = vmatpush2.bf16.msra.mxu0 %v728
        %880 = vmatprep.subr.bf16.mxu0 %v723
        %881 = vmatpush2.bf16.msra.mxu0 %v722
        %882 = vmatprep.subr.bf16.mxu0 %v717
        %883 = vmatpush2.bf16.msra.mxu0 %v716
        %884 = vmatprep.subr.bf16.mxu0 %v711
        %885 = vmatpush2.bf16.msra.mxu0 %v710
        %886 = vmatprep.mubr.bf16.mxu0 %v371
        %887 = vmatmul.mubr.bf16.gmra.mxu0 %v370
        %v888 = vpop.f32.mrf.mxu0
        %v889 = vadd.f32 0.0, %v888
        %v890 = vpop.f32.mrf.mxu0
        %v891 = vadd.f32 0.0, %v890
        %v892 = vpop.f32.mrf.mxu0
        %v893 = vadd.f32 0.0, %v892
        %v894 = vpop.f32.mrf.mxu0
        %v895 = vadd.f32 0.0, %v894
        %896 = vdwg.mxu0
        %897 = vmatprep.subr.bf16.mxu0 %v707
        %898 = vmatpush1.bf16.msra.mxu0 %v706
        %899 = vmatprep.subr.bf16.mxu0 %v701
        %900 = vmatpush1.bf16.msra.mxu0 %v700
        %901 = vmatprep.subr.bf16.mxu0 %v695
        %902 = vmatpush1.bf16.msra.mxu0 %v694
        %903 = vmatprep.subr.bf16.mxu0 %v689
        %904 = vmatpush1.bf16.msra.mxu0 %v688
        %905 = vmatprep.subr.bf16.mxu0 %v683
        %906 = vmatpush1.bf16.msra.mxu0 %v682
        %907 = vmatprep.subr.bf16.mxu0 %v677
        %908 = vmatpush1.bf16.msra.mxu0 %v676
        %909 = vmatprep.subr.bf16.mxu0 %v671
        %910 = vmatpush1.bf16.msra.mxu0 %v670
        %911 = vmatprep.subr.bf16.mxu0 %v665
        %912 = vmatpush1.bf16.msra.mxu0 %v664
        %913 = vmatprep.subr.bf16.mxu0 %v755
        %914 = vmatpush2.bf16.msra.mxu0 %v754
        %915 = vmatprep.subr.bf16.mxu0 %v749
        %916 = vmatpush2.bf16.msra.mxu0 %v748
        %917 = vmatprep.subr.bf16.mxu0 %v743
        %918 = vmatpush2.bf16.msra.mxu0 %v742
        %919 = vmatprep.subr.bf16.mxu0 %v737
        %920 = vmatpush2.bf16.msra.mxu0 %v736
        %921 = vmatprep.subr.bf16.mxu0 %v731
        %922 = vmatpush2.bf16.msra.mxu0 %v730
        %923 = vmatprep.subr.bf16.mxu0 %v725
        %924 = vmatpush2.bf16.msra.mxu0 %v724
        %925 = vmatprep.subr.bf16.mxu0 %v719
        %926 = vmatpush2.bf16.msra.mxu0 %v718
        %927 = vmatprep.subr.bf16.mxu0 %v713
        %928 = vmatpush2.bf16.msra.mxu0 %v712
        %929 = vmatprep.mubr.bf16.mxu0 %v371
        %930 = vmatmul.mubr.bf16.gmra.mxu0 %v370
        %v931 = vpop.f32.mrf.mxu0
        %v932 = vadd.f32 0.0, %v931
        %v933 = vpop.f32.mrf.mxu0
        %v934 = vadd.f32 0.0, %v933
        %v935 = vpop.f32.mrf.mxu0
        %v936 = vadd.f32 0.0, %v935
        %v937 = vpop.f32.mrf.mxu0
        %v938 = vadd.f32 0.0, %v937
        %939 = vdwg.mxu0
        %940 = vmatprep.subr.bf16.mxu0 %v709
        %941 = vmatpush1.bf16.msra.mxu0 %v708
        %942 = vmatprep.subr.bf16.mxu0 %v703
        %943 = vmatpush1.bf16.msra.mxu0 %v702
        %944 = vmatprep.subr.bf16.mxu0 %v697
        %945 = vmatpush1.bf16.msra.mxu0 %v696
        %946 = vmatprep.subr.bf16.mxu0 %v691
        %947 = vmatpush1.bf16.msra.mxu0 %v690
        %948 = vmatprep.subr.bf16.mxu0 %v685
        %949 = vmatpush1.bf16.msra.mxu0 %v684
        %950 = vmatprep.subr.bf16.mxu0 %v679
        %951 = vmatpush1.bf16.msra.mxu0 %v678
        %952 = vmatprep.subr.bf16.mxu0 %v673
        %953 = vmatpush1.bf16.msra.mxu0 %v672
        %954 = vmatprep.subr.bf16.mxu0 %v667
        %955 = vmatpush1.bf16.msra.mxu0 %v666
        %956 = vmatprep.subr.bf16.mxu0 %v757
        %957 = vmatpush2.bf16.msra.mxu0 %v756
        %958 = vmatprep.subr.bf16.mxu0 %v751
        %959 = vmatpush2.bf16.msra.mxu0 %v750
        %960 = vmatprep.subr.bf16.mxu0 %v745
        %961 = vmatpush2.bf16.msra.mxu0 %v744
        %962 = vmatprep.subr.bf16.mxu0 %v739
        %963 = vmatpush2.bf16.msra.mxu0 %v738
        %964 = vmatprep.subr.bf16.mxu0 %v733
        %965 = vmatpush2.bf16.msra.mxu0 %v732
        %966 = vmatprep.subr.bf16.mxu0 %v727
        %967 = vmatpush2.bf16.msra.mxu0 %v726
        %968 = vmatprep.subr.bf16.mxu0 %v721
        %969 = vmatpush2.bf16.msra.mxu0 %v720
        %970 = vmatprep.subr.bf16.mxu0 %v715
        %971 = vmatpush2.bf16.msra.mxu0 %v714
        %972 = vmatprep.mubr.bf16.mxu0 %v371
        %973 = vmatmul.mubr.bf16.gmra.mxu0 %v370
        %v974 = vpop.f32.mrf.mxu0
        %v975 = vadd.f32 0.0, %v974
        %v976 = vpop.f32.mrf.mxu0
        %v977 = vadd.f32 0.0, %v976
        %v978 = vpop.f32.mrf.mxu0
        %v979 = vadd.f32 0.0, %v978
        %v980 = vpop.f32.mrf.mxu0
        %v981 = vadd.f32 0.0, %v980
        %982 = vdwg.mxu0
        %v983 = vxor.u32 %v889, 2147483648
        %v984 = vxor.u32 %v891, 2147483648
        %v985 = vxor.u32 %v932, 2147483648
        %v986 = vxor.u32 %v893, 2147483648
        %v987 = vxor.u32 %v895, 2147483648
        %v988 = vxor.u32 %v936, 2147483648
        %v989 = vmul.f32 %v983, 1.442695
        %v990 = vpow.pop %v989
        %v991 = vmul.f32 %v984, 1.442695
        %v992 = vpow.pop %v991
        %v993 = vmul.f32 %v985, 1.442695
        %v994 = vpow.pop %v993
        %v995 = vmul.f32 %v986, 1.442695
        %v996 = vpow.pop %v995
        %v997 = vmul.f32 %v987, 1.442695
        %v998 = vpow.pop %v997
        %v999 = vmul.f32 %v988, 1.442695
        %v1000 = vpow.pop %v999
        %v1001 = vadd.f32 %v990, 1.0
        %v1002 = vadd.f32 %v992, 1.0
        %v1003 = vadd.f32 %v994, 1.0
        %v1004 = vadd.f32 %v996, 1.0
        %v1005 = vadd.f32 %v998, 1.0
        %v1006 = vadd.f32 %v1000, 1.0
        %v1007 = vrcp.pop %v1001
        %v1008 = vmul.f32 1.0, %v1007
        %v1009 = vrcp.pop %v1002
        %v1010 = vmul.f32 1.0, %v1009
        %v1011 = vrcp.pop %v1003
        %v1012 = vmul.f32 1.0, %v1011
        %v1013 = vrcp.pop %v1004
        %v1014 = vmul.f32 1.0, %v1013
        %v1015 = vrcp.pop %v1005
        %v1016 = vmul.f32 1.0, %v1015
        %v1017 = vrcp.pop %v1006
        %v1018 = vmul.f32 1.0, %v1017
        %v1019 = vmul.f32 %v889, %v1008
        %v1020 = vmul.f32 %v891, %v1010
        %v1021 = vmul.f32 %v932, %v1012
        %v1022 = vmul.f32 %v893, %v1014
        %v1023 = vmul.f32 %v895, %v1016
        %v1024 = vmul.f32 %v936, %v1018
        %v1025 = vmul.f32 %v1019, %v934
        %v1026 = vmul.f32 %v1020, %v975
        %v1027 = vmul.f32 %v1021, %v977
        %v1028 = vmul.f32 %v1022, %v938
        %v1029 = vmul.f32 %v1023, %v979
        %v1030 = vmul.f32 %v1024, %v981
        %v1031 = vld [vmem:[#allocation2] sm:$0xff]
        %v1032 = vld [vmem:[#allocation2 + $0x8] sm:$0xff]
        %v1033 = vld [vmem:[#allocation2 + $0x10] sm:$0xff]
        %v1034 = vld [vmem:[#allocation2 + $0x18] sm:$0xff]
        %v1035 = vpack.c.bf16 %v1028, %v1025
        %v1036 = vpack.c.bf16 %v1029, %v1026
        %v1037 = vpack.c.bf16 %v1030, %v1027
        %v1038 = vld [vmem:[%s232] sm:$0xff]
        %v1039 = vld [vmem:[%s232 + $0x8] sm:$0xff]
        %v1040 = vld [vmem:[%s232 + $0x10] sm:$0xff]
        %v1041 = vld [vmem:[%s232 + $0x18] sm:$0xff]
        %v1042 = vld [vmem:[%s232 + $0x20] sm:$0xff]
        %v1043 = vld [vmem:[%s232 + $0x28] sm:$0xff]
        %v1044 = vld [vmem:[%s232 + $0x30] sm:$0xff]
        %v1045 = vld [vmem:[%s232 + $0x38] sm:$0xff]
        %v1046 = vld [vmem:[%s232 + $0x40] sm:$0xff]
        %v1047 = vld [vmem:[%s232 + $0x48] sm:$0xff]
        %v1048 = vld [vmem:[%s232 + $0x50] sm:$0xff]
        %v1049 = vld [vmem:[%s232 + $0x58] sm:$0xff]
        %v1050 = vld [vmem:[%s232 + $0x60] sm:$0xff]
        %v1051 = vld [vmem:[%s232 + $0x68] sm:$0xff]
        %v1052 = vld [vmem:[%s232 + $0x70] sm:$0xff]
        %v1053 = vld [vmem:[%s232 + $0x78] sm:$0xff]
        %v1054 = vld [vmem:[%s232 + $0x80] sm:$0xff]
        %v1055 = vld [vmem:[%s232 + $0x88] sm:$0xff]
        %v1056 = vld [vmem:[%s232 + $0x90] sm:$0xff]
        %v1057 = vld [vmem:[%s232 + $0x98] sm:$0xff]
        %v1058 = vld [vmem:[%s232 + $0xa0] sm:$0xff]
        %v1059 = vld [vmem:[%s232 + $0xa8] sm:$0xff]
        %v1060 = vld [vmem:[%s232 + $0xb0] sm:$0xff]
        %v1061 = vld [vmem:[%s232 + $0xb8] sm:$0xff]
        %v1062 = vld [vmem:[%s232 + $0xc0] sm:$0xff]
        %v1063 = vld [vmem:[%s232 + $0xc8] sm:$0xff]
        %v1064 = vld [vmem:[%s232 + $0xd0] sm:$0xff]
        %v1065 = vld [vmem:[%s232 + $0xd8] sm:$0xff]
        %v1066 = vld [vmem:[%s232 + $0xe0] sm:$0xff]
        %v1067 = vld [vmem:[%s232 + $0xe8] sm:$0xff]
        %v1068 = vld [vmem:[%s232 + $0xf0] sm:$0xff]
        %v1069 = vld [vmem:[%s232 + $0xf8] sm:$0xff]
        %v1070 = vld [vmem:[%s232 + $0x100] sm:$0xff]
        %v1071 = vld [vmem:[%s232 + $0x108] sm:$0xff]
        %v1072 = vld [vmem:[%s232 + $0x110] sm:$0xff]
        %v1073 = vld [vmem:[%s232 + $0x118] sm:$0xff]
        %v1074 = vld [vmem:[%s232 + $0x120] sm:$0xff]
        %v1075 = vld [vmem:[%s232 + $0x128] sm:$0xff]
        %v1076 = vld [vmem:[%s232 + $0x130] sm:$0xff]
        %v1077 = vld [vmem:[%s232 + $0x138] sm:$0xff]
        %v1078 = vld [vmem:[%s232 + $0x140] sm:$0xff]
        %v1079 = vld [vmem:[%s232 + $0x148] sm:$0xff]
        %v1080 = vld [vmem:[%s232 + $0x150] sm:$0xff]
        %v1081 = vld [vmem:[%s232 + $0x158] sm:$0xff]
        %v1082 = vld [vmem:[%s232 + $0x160] sm:$0xff]
        %v1083 = vld [vmem:[%s232 + $0x168] sm:$0xff]
        %v1084 = vld [vmem:[%s232 + $0x170] sm:$0xff]
        %v1085 = vld [vmem:[%s232 + $0x178] sm:$0xff]
        %v1134 = vunpack.c.l.b16 %v1038
        %v1135 = vunpack.c.h.b16 %v1038
        %v1136 = vunpack.c.l.b16 %v1039
        %v1137 = vunpack.c.h.b16 %v1039
        %v1138 = vunpack.c.l.b16 %v1040
        %v1139 = vunpack.c.h.b16 %v1040
        %v1140 = vunpack.c.l.b16 %v1041
        %v1141 = vunpack.c.h.b16 %v1041
        %v1142 = vunpack.c.l.b16 %v1042
        %v1143 = vunpack.c.h.b16 %v1042
        %v1144 = vunpack.c.l.b16 %v1043
        %v1145 = vunpack.c.h.b16 %v1043
        %v1146 = vunpack.c.l.b16 %v1044
        %v1147 = vunpack.c.h.b16 %v1044
        %v1148 = vunpack.c.l.b16 %v1045
        %v1149 = vunpack.c.h.b16 %v1045
        %v1150 = vunpack.c.l.b16 %v1046
        %v1151 = vunpack.c.h.b16 %v1046
        %v1152 = vunpack.c.l.b16 %v1047
        %v1153 = vunpack.c.h.b16 %v1047
        %v1154 = vunpack.c.l.b16 %v1048
        %v1155 = vunpack.c.h.b16 %v1048
        %v1156 = vunpack.c.l.b16 %v1049
        %v1157 = vunpack.c.h.b16 %v1049
        %v1158 = vunpack.c.l.b16 %v1050
        %v1159 = vunpack.c.h.b16 %v1050
        %v1160 = vunpack.c.l.b16 %v1051
        %v1161 = vunpack.c.h.b16 %v1051
        %v1162 = vunpack.c.l.b16 %v1052
        %v1163 = vunpack.c.h.b16 %v1052
        %v1164 = vunpack.c.l.b16 %v1053
        %v1165 = vunpack.c.h.b16 %v1053
        %v1166 = vunpack.c.l.b16 %v1054
        %v1167 = vunpack.c.h.b16 %v1054
        %v1168 = vunpack.c.l.b16 %v1055
        %v1169 = vunpack.c.h.b16 %v1055
        %v1170 = vunpack.c.l.b16 %v1056
        %v1171 = vunpack.c.h.b16 %v1056
        %v1172 = vunpack.c.l.b16 %v1057
        %v1173 = vunpack.c.h.b16 %v1057
        %v1174 = vunpack.c.l.b16 %v1058
        %v1175 = vunpack.c.h.b16 %v1058
        %v1176 = vunpack.c.l.b16 %v1059
        %v1177 = vunpack.c.h.b16 %v1059
        %v1178 = vunpack.c.l.b16 %v1060
        %v1179 = vunpack.c.h.b16 %v1060
        %v1180 = vunpack.c.l.b16 %v1061
        %v1181 = vunpack.c.h.b16 %v1061
        %v1182 = vunpack.c.l.b16 %v1062
        %v1183 = vunpack.c.h.b16 %v1062
        %v1184 = vunpack.c.l.b16 %v1063
        %v1185 = vunpack.c.h.b16 %v1063
        %v1186 = vunpack.c.l.b16 %v1064
        %v1187 = vunpack.c.h.b16 %v1064
        %v1188 = vunpack.c.l.b16 %v1065
        %v1189 = vunpack.c.h.b16 %v1065
        %v1190 = vunpack.c.l.b16 %v1066
        %v1191 = vunpack.c.h.b16 %v1066
        %v1192 = vunpack.c.l.b16 %v1067
        %v1193 = vunpack.c.h.b16 %v1067
        %v1194 = vunpack.c.l.b16 %v1068
        %v1195 = vunpack.c.h.b16 %v1068
        %v1196 = vunpack.c.l.b16 %v1069
        %v1197 = vunpack.c.h.b16 %v1069
        %v1198 = vunpack.c.l.b16 %v1070
        %v1199 = vunpack.c.h.b16 %v1070
        %v1200 = vunpack.c.l.b16 %v1071
        %v1201 = vunpack.c.h.b16 %v1071
        %v1202 = vunpack.c.l.b16 %v1072
        %v1203 = vunpack.c.h.b16 %v1072
        %v1204 = vunpack.c.l.b16 %v1073
        %v1205 = vunpack.c.h.b16 %v1073
        %v1206 = vunpack.c.l.b16 %v1074
        %v1207 = vunpack.c.h.b16 %v1074
        %v1208 = vunpack.c.l.b16 %v1075
        %v1209 = vunpack.c.h.b16 %v1075
        %v1210 = vunpack.c.l.b16 %v1076
        %v1211 = vunpack.c.h.b16 %v1076
        %v1212 = vunpack.c.l.b16 %v1077
        %v1213 = vunpack.c.h.b16 %v1077
        %v1214 = vunpack.c.l.b16 %v1078
        %v1215 = vunpack.c.h.b16 %v1078
        %v1216 = vunpack.c.l.b16 %v1079
        %v1217 = vunpack.c.h.b16 %v1079
        %v1218 = vunpack.c.l.b16 %v1080
        %v1219 = vunpack.c.h.b16 %v1080
        %v1220 = vunpack.c.l.b16 %v1081
        %v1221 = vunpack.c.h.b16 %v1081
        %v1222 = vunpack.c.l.b16 %v1082
        %v1223 = vunpack.c.h.b16 %v1082
        %v1224 = vunpack.c.l.b16 %v1083
        %v1225 = vunpack.c.h.b16 %v1083
        %v1226 = vunpack.c.l.b16 %v1084
        %v1227 = vunpack.c.h.b16 %v1084
        %v1228 = vunpack.c.l.b16 %v1085
        %v1229 = vunpack.c.h.b16 %v1085
        %v1230 = vpack.c.b16 %v1136, %v1134
        %v1231 = vpack.c.b16 %v1137, %v1135
        %v1232 = vpack.c.b16 %v1140, %v1138
        %v1233 = vpack.c.b16 %v1141, %v1139
        %v1234 = vpack.c.b16 %v1144, %v1142
        %v1235 = vpack.c.b16 %v1145, %v1143
        %v1236 = vpack.c.b16 %v1148, %v1146
        %v1237 = vpack.c.b16 %v1149, %v1147
        %v1238 = vpack.c.b16 %v1152, %v1150
        %v1239 = vpack.c.b16 %v1153, %v1151
        %v1240 = vpack.c.b16 %v1156, %v1154
        %v1241 = vpack.c.b16 %v1157, %v1155
        %v1242 = vpack.c.b16 %v1160, %v1158
        %v1243 = vpack.c.b16 %v1161, %v1159
        %v1244 = vpack.c.b16 %v1164, %v1162
        %v1245 = vpack.c.b16 %v1165, %v1163
        %v1246 = vpack.c.b16 %v1168, %v1166
        %v1247 = vpack.c.b16 %v1169, %v1167
        %v1248 = vpack.c.b16 %v1172, %v1170
        %v1249 = vpack.c.b16 %v1173, %v1171
        %v1250 = vpack.c.b16 %v1176, %v1174
        %v1251 = vpack.c.b16 %v1177, %v1175
        %v1252 = vpack.c.b16 %v1180, %v1178
        %v1253 = vpack.c.b16 %v1181, %v1179
        %v1254 = vpack.c.b16 %v1184, %v1182
        %v1255 = vpack.c.b16 %v1185, %v1183
        %v1256 = vpack.c.b16 %v1188, %v1186
        %v1257 = vpack.c.b16 %v1189, %v1187
        %v1258 = vpack.c.b16 %v1192, %v1190
        %v1259 = vpack.c.b16 %v1193, %v1191
        %v1260 = vpack.c.b16 %v1196, %v1194
        %v1261 = vpack.c.b16 %v1197, %v1195
        %v1262 = vpack.c.b16 %v1200, %v1198
        %v1263 = vpack.c.b16 %v1201, %v1199
        %v1264 = vpack.c.b16 %v1204, %v1202
        %v1265 = vpack.c.b16 %v1205, %v1203
        %v1266 = vpack.c.b16 %v1208, %v1206
        %v1267 = vpack.c.b16 %v1209, %v1207
        %v1268 = vpack.c.b16 %v1212, %v1210
        %v1269 = vpack.c.b16 %v1213, %v1211
        %v1270 = vpack.c.b16 %v1216, %v1214
        %v1271 = vpack.c.b16 %v1217, %v1215
        %v1272 = vpack.c.b16 %v1220, %v1218
        %v1273 = vpack.c.b16 %v1221, %v1219
        %v1274 = vpack.c.b16 %v1224, %v1222
        %v1275 = vpack.c.b16 %v1225, %v1223
        %v1276 = vpack.c.b16 %v1228, %v1226
        %v1277 = vpack.c.b16 %v1229, %v1227
        %1326 = vmatprep.subr.bf16.mxu0 %v1245
        %1327 = vmatpush1.bf16.msra.mxu0 %v1244
        %1328 = vmatprep.subr.bf16.mxu0 %v1243
        %1329 = vmatpush1.bf16.msra.mxu0 %v1242
        %1330 = vmatprep.subr.bf16.mxu0 %v1241
        %1331 = vmatpush1.bf16.msra.mxu0 %v1240
        %1332 = vmatprep.subr.bf16.mxu0 %v1239
        %1333 = vmatpush1.bf16.msra.mxu0 %v1238
        %1334 = vmatprep.subr.bf16.mxu0 %v1237
        %1335 = vmatpush1.bf16.msra.mxu0 %v1236
        %1336 = vmatprep.subr.bf16.mxu0 %v1235
        %1337 = vmatpush1.bf16.msra.mxu0 %v1234
        %1338 = vmatprep.subr.bf16.mxu0 %v1233
        %1339 = vmatpush1.bf16.msra.mxu0 %v1232
        %1340 = vmatprep.subr.bf16.mxu0 %v1231
        %1341 = vmatpush1.bf16.msra.mxu0 %v1230
        %1342 = vmatprep.subr.bf16.mxu0 %v1261
        %1343 = vmatpush2.bf16.msra.mxu0 %v1260
        %1344 = vmatprep.subr.bf16.mxu0 %v1259
        %1345 = vmatpush2.bf16.msra.mxu0 %v1258
        %1346 = vmatprep.subr.bf16.mxu0 %v1257
        %1347 = vmatpush2.bf16.msra.mxu0 %v1256
        %1348 = vmatprep.subr.bf16.mxu0 %v1255
        %1349 = vmatpush2.bf16.msra.mxu0 %v1254
        %1350 = vmatprep.subr.bf16.mxu0 %v1253
        %1351 = vmatpush2.bf16.msra.mxu0 %v1252
        %1352 = vmatprep.subr.bf16.mxu0 %v1251
        %1353 = vmatpush2.bf16.msra.mxu0 %v1250
        %1354 = vmatprep.subr.bf16.mxu0 %v1249
        %1355 = vmatpush2.bf16.msra.mxu0 %v1248
        %1356 = vmatprep.subr.bf16.mxu0 %v1247
        %1357 = vmatpush2.bf16.msra.mxu0 %v1246
        %1358 = vmatprep.mubr.bf16.mxu0 %v1036
        %1359 = vmatmul.mubr.bf16.gmra.mxu0 %v1035
        %v1360 = vpop.f32.mrf.mxu0
        %v1361 = vadd.f32 0.0, %v1360
        %v1362 = vpop.f32.mrf.mxu0
        %v1363 = vadd.f32 0.0, %v1362
        %v1364 = vpop.f32.mrf.mxu0
        %v1365 = vadd.f32 0.0, %v1364
        %v1366 = vpop.f32.mrf.mxu0
        %v1367 = vadd.f32 0.0, %v1366
        %1368 = vdwg.mxu0
        %1369 = vmatprep.subr.bf16.mxu0 %v1277
        %1370 = vmatpush1.bf16.msra.mxu0 %v1276
        %1371 = vmatprep.subr.bf16.mxu0 %v1275
        %1372 = vmatpush1.bf16.msra.mxu0 %v1274
        %1373 = vmatprep.subr.bf16.mxu0 %v1273
        %1374 = vmatpush1.bf16.msra.mxu0 %v1272
        %1375 = vmatprep.subr.bf16.mxu0 %v1271
        %1376 = vmatpush1.bf16.msra.mxu0 %v1270
        %1377 = vmatprep.subr.bf16.mxu0 %v1269
        %1378 = vmatpush1.bf16.msra.mxu0 %v1268
        %1379 = vmatprep.subr.bf16.mxu0 %v1267
        %1380 = vmatpush1.bf16.msra.mxu0 %v1266
        %1381 = vmatprep.subr.bf16.mxu0 %v1265
        %1382 = vmatpush1.bf16.msra.mxu0 %v1264
        %1383 = vmatprep.subr.bf16.mxu0 %v1263
        %1384 = vmatpush1.bf16.msra.mxu0 %v1262
        %1385 = vmatprep.subr.bf16.mxu0 0
        %1386 = vmatpush2.bf16.msra.mxu0 0
        %1387 = vmatprep.subr.bf16.mxu0 0
        %1388 = vmatpush2.bf16.msra.mxu0 0
        %1389 = vmatprep.subr.bf16.mxu0 0
        %1390 = vmatpush2.bf16.msra.mxu0 0
        %1391 = vmatprep.subr.bf16.mxu0 0
        %1392 = vmatpush2.bf16.msra.mxu0 0
        %1393 = vmatprep.subr.bf16.mxu0 0
        %1394 = vmatpush2.bf16.msra.mxu0 0
        %1395 = vmatprep.subr.bf16.mxu0 0
        %1396 = vmatpush2.bf16.msra.mxu0 0
        %1397 = vmatprep.subr.bf16.mxu0 0
        %1398 = vmatpush2.bf16.msra.mxu0 0
        %1399 = vmatprep.subr.bf16.mxu0 0
        %1400 = vmatpush2.bf16.msra.mxu0 0
        %1401 = vmatprep.mubr.bf16.mxu0 0
        %1402 = vmatmul.mubr.bf16.gmra.mxu0 %v1037
        %v1403 = vpop.f32.mrf.mxu0
        %v1404 = vadd.f32 %v1361, %v1403
        %v1405 = vpop.f32.mrf.mxu0
        %v1406 = vadd.f32 %v1363, %v1405
        %v1407 = vpop.f32.mrf.mxu0
        %v1408 = vadd.f32 %v1365, %v1407
        %v1409 = vpop.f32.mrf.mxu0
        %v1410 = vadd.f32 %v1367, %v1409
        %1411 = vdwg.mxu0
        %v1412 = vadd.f32 %v1031, %v1404
        %v1413 = vadd.f32 %v1032, %v1406
        %v1414 = vadd.f32 %v1033, %v1408
        %v1415 = vadd.f32 %v1034, %v1410
        %1416 = vst [vmem:[#allocation2] sm:$0xff] %v1412
        %1417 = vst [vmem:[#allocation2 + $0x8] sm:$0xff] %v1413
        %1418 = vst [vmem:[#allocation2 + $0x10] sm:$0xff] %v1414
        %1419 = vst [vmem:[#allocation2 + $0x18] sm:$0xff] %v1415
        %p1420 = scmp.eq.s32.totalorder %s24, 1
        // Predicated region
        $region49: #{tpu_custom_call.1} parent=31 // pred_check
          %p1421 = pneg %p1420
        $region50: #{tpu_custom_call.1} parent=31 // pred_check_branch
          %1423 = sbr.rel (%p1421) target = $region52
        $region51: #{tpu_custom_call.1} parent=31 // pred_region
          %v1424 = vld [vmem:[#allocation2] sm:$0xff]
          %v1425 = vld [vmem:[#allocation2 + $0x8] sm:$0xff]
          %v1426 = vld [vmem:[#allocation2 + $0x10] sm:$0xff]
          %v1427 = vld [vmem:[#allocation2 + $0x18] sm:$0xff]
          %1428 = vst [vmem:[#allocation9] sm:$0xff] %v1424
          %1429 = vst [vmem:[#allocation9 + $0x8] sm:$0xff] %v1425
          %1430 = vst [vmem:[#allocation9 + $0x10] sm:$0xff] %v1426
          %1431 = vst [vmem:[#allocation9 + $0x18] sm:$0xff] %v1427
        $region52: #{tpu_custom_call.1} parent=31 // pred_fallthru
          _
        // Predicated region
        $region53: #{tpu_custom_call.1} parent=31 // pred_check
          %p1432 = pneg %p127
        $region54: #{tpu_custom_call.1} parent=31 // pred_check_branch
          %1434 = sbr.rel (%p1432) target = $region56
        $region55: #{tpu_custom_call.1} parent=31 // pred_region
          %s1435 = smul.u32 2, %s23
          %s1437 = ssub.s32 512, 512
          %1438 = vsyncadd [#allocation5], %s1437
          %s1439 = smul.addr %s1435, 2
          %s1440 = smul.addr %s1439, 128
          %s1441 = scalar_lea.hbm %s3, %s1440
          %s1442 = sshll.u32 [#allocation9], 4
          %s1443 = int_to_ptr.vmem [resolvable:$true] %s1442
          %1448 = dma.vmem_to_hbm [thread:$0]  %s1443, 512, %s1441, [#allocation5], 256, 256, 16
        $region56: #{tpu_custom_call.1} parent=31 // pred_fallthru
          _
        // Predicated region
        $region57: #{tpu_custom_call.1} parent=31 // pred_check
          %p1449 = pneg %p127
        $region58: #{tpu_custom_call.1} parent=31 // pred_check_branch
          %1451 = sbr.rel (%p1449) target = $region60
        $region59: #{tpu_custom_call.1} parent=31 // pred_region
          %1452 = dma.done [#allocation5], 512
        $region60: #{tpu_custom_call.1} parent=31 // pred_fallthru
          _
      $region32: #{tpu_custom_call.1} parent=5 // pred_fallthru
        _
      %p1453 = scmp.le.s32.totalorder 2, %s14
      // Predicated region
      $region61: #{tpu_custom_call.1} parent=5 // pred_check
        %p1454 = pneg %p1453
      $region62: #{tpu_custom_call.1} parent=5 // pred_check_branch
        %1456 = sbr.rel (%p1454) target = $region64
      $region63: #{tpu_custom_call.1} parent=5 // pred_region
        %s1457 = ssub.s32 %s14, 2
      $region64: #{tpu_custom_call.1} parent=5 // pred_fallthru
        _
    $region6: #{tpu_custom_call.1} parent=1 // loop_footer
      %s18 = sadd.s32 1, %s14
    $region7: #{tpu_custom_call.1} parent=1 // loop_footer_branch
      %13 = sbr.rel target = $region3
    $region8: #{tpu_custom_call.1} parent=1 // loop_exit
      _
    %1458 = vsyncpa [#allocation4], 1
    %s1459 = scalar_lea.sflag [#allocation4], 1
    %1460 = vsyncpa %s1459, 1
    %1461 = vsyncpa [#allocation7], 1
    %s1462 = scalar_lea.sflag [#allocation7], 1
    %1463 = vsyncpa %s1462, 1
    %1464 = vsyncpa [#allocation5], 1
    %s1465 = scalar_lea.sflag [#allocation5], 1
    %1466 = vsyncpa %s1465, 1

</llo_original>
